<compile_context>
chip_gen: v6e
topology: v6e:2x2x1
jax: 0.10.0
libtpu: 0.0.40
codegen_flags: <defaults>
</compile_context>

<pallas_src>
import functools
import math

import jax
import jax.numpy as jnp
from jax.experimental import pallas as pl
from jax.experimental.pallas import tpu as pltpu


def _mlp_kernel(n_layers, *refs):
    """Fused MLP forward, batch-on-lanes.

    refs = (x_ref, w0_ref, b0_ref, w1_ref, b1_ref, ..., o_ref)
      x_ref  : (batch_tile, H)   activations as stored in HBM (no wrapper transpose)
      wI_ref : (out_i, in_i)     PyTorch nn.Linear weight layout
      bI_ref : (out_i, 1)        broadcasts over the lane (batch) axis
      o_ref  : (1, batch_tile)   lane-dense output tile
    """
    x_ref = refs[0]
    o_ref = refs[-1]
    params = refs[1:-1]

    w0 = params[0][...]                              # (out0, H)
    b0 = params[1][...]                              # (out0, 1), f32
    x = x_ref[...].astype(w0.dtype)                  # (batch_tile, H)
    # First layer folds the (B,H)->(H,B) transpose into the contraction:
    #   (out0, H) . (bt, H) contracted over H  ->  (out0, bt)   ==  (x @ W0.T).T
    h = jax.lax.dot_general(
        w0, x, dimension_numbers=(((1,), (1,)), ((), ())),
        preferred_element_type=jnp.float32) + b0
    if n_layers > 1:
        h = jnp.maximum(h, 0.0)                      # ReLU on hidden layers only

    for li in range(1, n_layers):
        w = params[2 * li][...]                      # (out_i, in_i)
        b = params[2 * li + 1][...]                  # (out_i, 1), f32
        h = jnp.dot(w, h.astype(w.dtype), preferred_element_type=jnp.float32) + b
        if li < n_layers - 1:
            h = jnp.maximum(h, 0.0)

    o_ref[...] = h.astype(o_ref.dtype)               # (1, batch_tile), lane-dense


def _num_tensorcores():
    """Best-effort TensorCore-per-device count (v7x has 2; v5e/v6e have 1)."""
    try:
        d = jax.devices()[0]
        kind = (getattr(d, "device_kind", "") or "").lower()
        if "v7" in kind:
            return 2
    except Exception:
        pass
    return 1


def _choose_batch_tile(B, num_tc):
    """Pick a batch tile respecting the lane rule (tile == B or tile % 128 == 0)."""
    if B % 128 != 0:
        return B                                     # must use the full-array block
    if num_tc <= 1:
        # Single TensorCore: the grid is a strictly serial loop -> one big tile.
        if B <= 8192:
            return B
        for tile in (8192, 4096, 2048, 1024, 512, 256, 128):
            if B % tile == 0:
                return tile
        return B
    # Dual TensorCore (v7x): prefer an EVEN number of 'parallel' grid steps.
    for tile in (4096, 2048, 1024, 512, 256, 128):
        if B % tile == 0 and (B // tile) >= 2 and (B // tile) % 2 == 0:
            return tile
    for tile in (4096, 2048, 1024, 512, 256, 128):
        if B % tile == 0 and (B // tile) >= 2:
            return tile
    return B


def meta_step_loss_forward(x, weights, biases, *, batch_tile=None, use_pallas=None,
                           compute_dtype=jnp.float32):
    """Forward pass of MetaStepLossNetwork.

    x:        (B, H) float32
    weights:  list of (out_i, in_i) float32 arrays (PyTorch nn.Linear layout)
    biases:   list of (out_i, 1)    float32 arrays
    returns:  (B, 1) float32
    """
    B, H = x.shape
    n_layers = len(weights)
    out_dim = weights[-1].shape[0]                   # == 1 for this module

    if use_pallas is None:
        # Small-batch fast path: pallas dispatch + DMA setup dominates at B < 128.
        use_pallas = B >= 128
    if not use_pallas:
        return reference_forward(x, weights, biases)

    if batch_tile is None:
        batch_tile = _choose_batch_tile(B, _num_tensorcores())
    assert B % batch_tile == 0, "batch must be divisible by batch_tile"
    # Lane-dim rule: output block last dim must be a multiple of 128 or equal B.
    assert batch_tile == B or batch_tile % 128 == 0, (
        "batch_tile must be a multiple of 128 (lane width) or equal to B")
    n_steps = B // batch_tile

    # Input spec: x stays (B, H) in HBM -> single contiguous DMA chunk per step.
    x_index_map = lambda i: (i, 0)
    if n_steps >= 3:
        try:
            x_spec = pl.BlockSpec((batch_tile, H), x_index_map,
                                  pipeline_mode=pl.Buffered(3))
        except TypeError:  # older BlockSpec without pipeline_mode
            x_spec = pl.BlockSpec((batch_tile, H), x_index_map)
    else:
        x_spec = pl.BlockSpec((batch_tile, H), x_index_map)

    in_specs = [x_spec]
    args = [x]
    param_bytes = 0
    for w, b in zip(weights, biases):
        if compute_dtype != jnp.float32:
            w = w.astype(compute_dtype)              # halves weight DMA if bf16
        # Whole weight / bias is one block, resident for every grid step.
        in_specs.append(pl.BlockSpec(w.shape, lambda i: (0, 0)))
        in_specs.append(pl.BlockSpec(b.shape, lambda i: (0, 0)))
        args.append(w)
        args.append(b)
        param_bytes += w.size * w.dtype.itemsize + b.size * 4

    out_specs = pl.BlockSpec((out_dim, batch_tile), lambda i: (0, i))

    flops = 2 * B * sum(int(w.shape[0]) * int(w.shape[1]) for w in weights)
    bytes_accessed = B * H * 4 + param_bytes + B * out_dim * 4
    cost = pl.CostEstimate(flops=flops, transcendentals=0,
                           bytes_accessed=bytes_accessed)

    kernel = functools.partial(_mlp_kernel, n_layers)
    out_t = pl.pallas_call(
        kernel,
        out_shape=jax.ShapeDtypeStruct((out_dim, B), jnp.float32),
        grid=(n_steps,),
        in_specs=in_specs,
        out_specs=out_specs,
        compiler_params=pltpu.CompilerParams(dimension_semantics=("parallel",)),
        cost_estimate=cost,
    )(*args)

    if out_dim == 1:
        return out_t.reshape(B, 1)                   # same element order; no transpose op
    return out_t.T


def init_params(key, num_loss_hidden, num_loss_layers):
    """Deterministic init mimicking PyTorch Linear default (uniform +/- 1/sqrt(fan_in)).

    Weights are stored PyTorch-style as (out_features, in_features); biases as (out, 1).
    """
    weights, biases = [], []
    dims = [(num_loss_hidden, num_loss_hidden)] * (num_loss_layers - 1) + [
        (num_loss_hidden, 1)
    ]
    for fan_in, fan_out in dims:
        key, wk, bk = jax.random.split(key, 3)
        bound = 1.0 / math.sqrt(fan_in)
        w = jax.random.uniform(
            wk, (fan_out, fan_in), jnp.float32, minval=-bound, maxval=bound)
        b = jax.random.uniform(
            bk, (fan_out, 1), jnp.float32, minval=-bound, maxval=bound)
        weights.append(w)
        biases.append(b)
    return weights, biases


def reference_forward(x, weights, biases):
    """Pure-JAX reference matching PyTorch semantics: y = x @ W.T + b."""
    h = x
    n = len(weights)
    for li, (w, b) in enumerate(zip(weights, biases)):
        h = h @ w.T + b.reshape(1, -1)
        if li < n - 1:
            h = jnp.maximum(h, 0.0)
    return h


if __name__ == "__main__":
    num_loss_hidden = 32
    num_loss_layers = 3   # 2x (Linear+ReLU) + final Linear(H -> 1)

    key = jax.random.PRNGKey(0)
    key, pk = jax.random.split(key)
    weights, biases = init_params(pk, num_loss_hidden, num_loss_layers)

    # Case 1: tiny batch (typical meta-step call) -> pure-JAX fast path.
    key, xk = jax.random.split(key)
    x_small = jax.random.normal(xk, (8, num_loss_hidden), dtype=jnp.float32)
    out_small = jax.block_until_ready(meta_step_loss_forward(x_small, weights, biases))
    ref_small = reference_forward(x_small, weights, biases)
    assert out_small.shape == (8, 1), out_small.shape
    assert jnp.allclose(out_small, ref_small, atol=1e-5, rtol=1e-5), "mismatch (B=8 fast path)"

    # Case 2: tiny batch forced through the Pallas kernel (full-array block, grid=(1,)).
    out_small_k = jax.block_until_ready(
        meta_step_loss_forward(x_small, weights, biases, use_pallas=True))
    assert out_small_k.shape == (8, 1), out_small_k.shape
    assert jnp.allclose(out_small_k, ref_small, atol=1e-5, rtol=1e-5), "mismatch (B=8 kernel)"

    # Case 3: lane-dense batch through the kernel with generation-aware tile choice.
    key, xk = jax.random.split(key)
    x_big = jax.random.normal(xk, (256, num_loss_hidden), dtype=jnp.float32)
    out_big = jax.block_until_ready(meta_step_loss_forward(x_big, weights, biases))
    ref_big = reference_forward(x_big, weights, biases)
    assert out_big.shape == (256, 1), out_big.shape
    assert jnp.allclose(out_big, ref_big, atol=1e-5, rtol=1e-5), "mismatch (B=256)"

    # Case 4: multi-step grid (forced 128-wide tiles -> 4 steps, Buffered(3) input pipeline).
    key, xk = jax.random.split(key)
    x_multi = jax.random.normal(xk, (512, num_loss_hidden), dtype=jnp.float32)
    out_multi = jax.block_until_ready(
        meta_step_loss_forward(x_multi, weights, biases, batch_tile=128))
    ref_multi = reference_forward(x_multi, weights, biases)
    assert out_multi.shape == (512, 1), out_multi.shape
    assert jnp.allclose(out_multi, ref_multi, atol=1e-5, rtol=1e-5), "mismatch (B=512, tiled)"

    print("KERNEL_OK")
</pallas_src>

<mosaic_0001>
module attributes {stable_mosaic.version = 11 : i64} {
  func.func @_mlp_kernel(%arg0: i32, %arg1: memref<8x32xf32, #tpu.memory_space<vmem>>, %arg2: memref<32x32xf32, #tpu.memory_space<vmem>>, %arg3: memref<32x1xf32, #tpu.memory_space<vmem>>, %arg4: memref<32x32xf32, #tpu.memory_space<vmem>>, %arg5: memref<32x1xf32, #tpu.memory_space<vmem>>, %arg6: memref<1x32xf32, #tpu.memory_space<vmem>>, %arg7: memref<1x1xf32, #tpu.memory_space<vmem>>, %arg8: memref<1x8xf32, #tpu.memory_space<vmem>>) attributes {dimension_semantics = [#tpu.dimension_semantics<parallel>], iteration_bounds = array<i64: 1>, scalar_prefetch = 0 : i64, scratch_operands = 0 : i64, tpu.core_type = #tpu.core_type<tc>, window_params = [{transform_indices = @transform_0, window_bounds = array<i64: 8, 32>}, {pipeline_mode = #tpu.pipeline_mode<synchronous>, transform_indices = @transform_1, window_bounds = array<i64: 32, 32>}, {pipeline_mode = #tpu.pipeline_mode<synchronous>, transform_indices = @transform_2, window_bounds = array<i64: 32, 1>}, {pipeline_mode = #tpu.pipeline_mode<synchronous>, transform_indices = @transform_3, window_bounds = array<i64: 32, 32>}, {pipeline_mode = #tpu.pipeline_mode<synchronous>, transform_indices = @transform_4, window_bounds = array<i64: 32, 1>}, {pipeline_mode = #tpu.pipeline_mode<synchronous>, transform_indices = @transform_5, window_bounds = array<i64: 1, 32>}, {pipeline_mode = #tpu.pipeline_mode<synchronous>, transform_indices = @transform_6, window_bounds = array<i64: 1, 1>}, {transform_indices = @transform_7, window_bounds = array<i64: 1, 8>}]} {
    %c0 = arith.constant 0 : index
    %c0_0 = arith.constant 0 : index
    %0 = vector.load %arg2[%c0, %c0_0] : memref<32x32xf32, #tpu.memory_space<vmem>>, vector<32x32xf32>
    %c0_1 = arith.constant 0 : index
    %c0_2 = arith.constant 0 : index
    %1 = vector.load %arg3[%c0_1, %c0_2] : memref<32x1xf32, #tpu.memory_space<vmem>>, vector<32x1xf32>
    %c0_3 = arith.constant 0 : index
    %c0_4 = arith.constant 0 : index
    %2 = vector.load %arg1[%c0_3, %c0_4] : memref<8x32xf32, #tpu.memory_space<vmem>>, vector<8x32xf32>
    %cst = arith.constant dense<0.000000e+00> : vector<32x8xf32>
    %3 = tpu.matmul %0, %2, %cst {dimension_numbers = #tpu.dot_dimension_numbers<[1], [1], [0], [0], [0, 0, 1, 0], [], []>} : vector<32x32xf32>, vector<8x32xf32>, vector<32x8xf32> -> vector<32x8xf32>
    %4 = vector.broadcast %1 : vector<32x1xf32> to vector<32x8xf32>
    %5 = arith.addf %3, %4 : vector<32x8xf32>
    %cst_5 = arith.constant 0.000000e+00 : f32
    %6 = vector.broadcast %cst_5 : f32 to vector<32x8xf32>
    %7 = arith.maximumf %5, %6 : vector<32x8xf32>
    %c0_6 = arith.constant 0 : index
    %c0_7 = arith.constant 0 : index
    %8 = vector.load %arg4[%c0_6, %c0_7] : memref<32x32xf32, #tpu.memory_space<vmem>>, vector<32x32xf32>
    %c0_8 = arith.constant 0 : index
    %c0_9 = arith.constant 0 : index
    %9 = vector.load %arg5[%c0_8, %c0_9] : memref<32x1xf32, #tpu.memory_space<vmem>>, vector<32x1xf32>
    %cst_10 = arith.constant dense<0.000000e+00> : vector<32x8xf32>
    %10 = tpu.matmul %8, %7, %cst_10 {dimension_numbers = #tpu.dot_dimension_numbers<[1], [0], [0], [1], [0, 0, 1, 1], [], []>} : vector<32x32xf32>, vector<32x8xf32>, vector<32x8xf32> -> vector<32x8xf32>
    %11 = vector.broadcast %9 : vector<32x1xf32> to vector<32x8xf32>
    %12 = arith.addf %10, %11 : vector<32x8xf32>
    %cst_11 = arith.constant 0.000000e+00 : f32
    %13 = vector.broadcast %cst_11 : f32 to vector<32x8xf32>
    %14 = arith.maximumf %12, %13 : vector<32x8xf32>
    %c0_12 = arith.constant 0 : index
    %c0_13 = arith.constant 0 : index
    %15 = vector.load %arg6[%c0_12, %c0_13] : memref<1x32xf32, #tpu.memory_space<vmem>>, vector<1x32xf32>
    %c0_14 = arith.constant 0 : index
    %c0_15 = arith.constant 0 : index
    %16 = vector.load %arg7[%c0_14, %c0_15] : memref<1x1xf32, #tpu.memory_space<vmem>>, vector<1x1xf32>
    %cst_16 = arith.constant dense<0.000000e+00> : vector<1x8xf32>
    %17 = tpu.matmul %15, %14, %cst_16 {dimension_numbers = #tpu.dot_dimension_numbers<[1], [0], [0], [1], [0, 0, 1, 1], [], []>} : vector<1x32xf32>, vector<32x8xf32>, vector<1x8xf32> -> vector<1x8xf32>
    %18 = vector.broadcast %16 : vector<1x1xf32> to vector<1x8xf32>
    %19 = arith.addf %17, %18 : vector<1x8xf32>
    %c0_17 = arith.constant 0 : index
    %c0_18 = arith.constant 0 : index
    %20 = vector.load %arg8[%c0_17, %c0_18] : memref<1x8xf32, #tpu.memory_space<vmem>>, vector<1x8xf32>
    tpu.vector_store %arg8[%c0_17, %c0_18], %19 {strides = array<i32>} : memref<1x8xf32, #tpu.memory_space<vmem>>, vector<1x8xf32>,
    return
  }
  func.func @transform_0(%arg0: i32) -> (i32, i32) {
    %c0_i32 = arith.constant 0 : i32
    %c0_i32_0 = arith.constant 0 : i32
    return %arg0, %c0_i32 : i32, i32
  }
  func.func @transform_1(%arg0: i32) -> (i32, i32) {
    %c0_i32 = arith.constant 0 : i32
    %c0_i32_0 = arith.constant 0 : i32
    %c0_i32_1 = arith.constant 0 : i32
    return %c0_i32, %c0_i32_0 : i32, i32
  }
  func.func @transform_2(%arg0: i32) -> (i32, i32) {
    %c0_i32 = arith.constant 0 : i32
    %c0_i32_0 = arith.constant 0 : i32
    %c0_i32_1 = arith.constant 0 : i32
    return %c0_i32, %c0_i32_0 : i32, i32
  }
  func.func @transform_3(%arg0: i32) -> (i32, i32) {
    %c0_i32 = arith.constant 0 : i32
    %c0_i32_0 = arith.constant 0 : i32
    %c0_i32_1 = arith.constant 0 : i32
    return %c0_i32, %c0_i32_0 : i32, i32
  }
  func.func @transform_4(%arg0: i32) -> (i32, i32) {
    %c0_i32 = arith.constant 0 : i32
    %c0_i32_0 = arith.constant 0 : i32
    %c0_i32_1 = arith.constant 0 : i32
    return %c0_i32, %c0_i32_0 : i32, i32
  }
  func.func @transform_5(%arg0: i32) -> (i32, i32) {
    %c0_i32 = arith.constant 0 : i32
    %c0_i32_0 = arith.constant 0 : i32
    %c0_i32_1 = arith.constant 0 : i32
    return %c0_i32, %c0_i32_0 : i32, i32
  }
  func.func @transform_6(%arg0: i32) -> (i32, i32) {
    %c0_i32 = arith.constant 0 : i32
    %c0_i32_0 = arith.constant 0 : i32
    %c0_i32_1 = arith.constant 0 : i32
    return %c0_i32, %c0_i32_0 : i32, i32
  }
  func.func @transform_7(%arg0: i32) -> (i32, i32) {
    %c0_i32 = arith.constant 0 : i32
    %c0_i32_0 = arith.constant 0 : i32
    return %c0_i32, %arg0 : i32, i32
  }
}

</mosaic_0001>

<llo_original>
// kernel: tpu_custom_call.1
$region0: #{tpu_custom_call.1}
  #allocation0 [shape = 'u32[]', space=smem, size = 0x4, offset = 0x4, fixed_abs, tag = 'smem constant byte address 0x4 - core index']
  #allocation1 [shape = 'u32[144,128]{1,0:T(1,128)}', space=vmem, size = 0x12000, scoped, tag = 'internal scratch']
  #allocation2 [shape = 'f32[1,1]{1,0:T(1,128)S(1)}', space=vmem, size = 0x200, scoped, tag = 'scoped memory for tpu_custom_call.1']
  %s0 = inlined_call_operand.hbm [shape: f32[8,32], index: 0, kind: input, shape index: {}]
  %s1 = inlined_call_operand.vmem [shape: f32[32,32], index: 1, kind: input, shape index: {}]
  %s2 = inlined_call_operand.vmem [shape: f32[32,1], index: 2, kind: input, shape index: {}]
  %s3 = inlined_call_operand.vmem [shape: f32[32,32], index: 3, kind: input, shape index: {}]
  %s4 = inlined_call_operand.vmem [shape: f32[32,1], index: 4, kind: input, shape index: {}]
  %s5 = inlined_call_operand.vmem [shape: f32[1,32], index: 5, kind: input, shape index: {}]
  %s6 = inlined_call_operand.<no memory space> [shape: f32[1,1], index: 6, kind: input, shape index: {}]
  %s7 = inlined_call_operand.hbm [shape: f32[1,8], index: 7, kind: output, shape index: {}]
  %s8 = sld [smem:[#allocation0]]
  $region42: #{tpu_custom_call.1} parent=0
    _
  %s10 = ssub.s32 1, %s8
  %s11 = scalar_select 0, %s10, %s8
  %v12 = vstv %s6
  %13 = vst [vmem:[#allocation2] sm:$0x1] %v12
  $region1: #{tpu_custom_call.1} parent=0
    #allocation3 [shape = 'u8[4096]{0}', space=vmem, size = 0x1000, scoped, tag = 'input window, operand 0, single buffered']
    #allocation4 [shape = 's32[1]{0}', space=sflag, size = 0x4, scoped, tag = 'scoped memory for tpu_custom_call.1']
    #allocation5 [shape = 's32[1]{0}', space=sflag, size = 0x4, scoped, tag = 'scoped memory for tpu_custom_call.1']
    #allocation6 [shape = 'u8[512]{0}', space=vmem, size = 0x400, scoped, tag = 'output window, operand 0, single buffered']
    %14 = vsyncpa [#allocation4], 0
    %15 = vsyncpa [#allocation5], 0
    // Predicated region
    $region2: #{tpu_custom_call.1} parent=1 // pred_check
      _
    $region3: #{tpu_custom_call.1} parent=1 // pred_check_branch
      %17 = sbr.rel (0) target = $region5
    $region4: #{tpu_custom_call.1} parent=1 // pred_region
      %s19 = ssub.s32 128, 128
      %20 = vsyncadd [#allocation4], %s19
      %s22 = sshll.u32 [#allocation3], 4
      %s23 = int_to_ptr.vmem [resolvable:$true] %s22
      %25 = dma.hbm_to_vmem [thread:$0]  %s0, 128, %s23, [#allocation4]
    $region5: #{tpu_custom_call.1} parent=1 // pred_fallthru
      _
    // Predicated region
    $region6: #{tpu_custom_call.1} parent=1 // pred_check
      _
    $region7: #{tpu_custom_call.1} parent=1 // pred_check_branch
      %27 = sbr.rel (0) target = $region9
    $region8: #{tpu_custom_call.1} parent=1 // pred_region
      _
    $region9: #{tpu_custom_call.1} parent=1 // pred_fallthru
      _
    // Predicated region
    $region10: #{tpu_custom_call.1} parent=1 // pred_check
      _
    $region11: #{tpu_custom_call.1} parent=1 // pred_check_branch
      %29 = sbr.rel (0) target = $region13
    $region12: #{tpu_custom_call.1} parent=1 // pred_region
      _
    $region13: #{tpu_custom_call.1} parent=1 // pred_fallthru
      _
    // Predicated region
    $region14: #{tpu_custom_call.1} parent=1 // pred_check
      _
    $region15: #{tpu_custom_call.1} parent=1 // pred_check_branch
      %31 = sbr.rel (0) target = $region17
    $region16: #{tpu_custom_call.1} parent=1 // pred_region
      _
    $region17: #{tpu_custom_call.1} parent=1 // pred_fallthru
      _
    // Predicated region
    $region18: #{tpu_custom_call.1} parent=1 // pred_check
      _
    $region19: #{tpu_custom_call.1} parent=1 // pred_check_branch
      %33 = sbr.rel (0) target = $region21
    $region20: #{tpu_custom_call.1} parent=1 // pred_region
      _
    $region21: #{tpu_custom_call.1} parent=1 // pred_fallthru
      _
    // Predicated region
    $region22: #{tpu_custom_call.1} parent=1 // pred_check
      _
    $region23: #{tpu_custom_call.1} parent=1 // pred_check_branch
      %35 = sbr.rel (0) target = $region25
    $region24: #{tpu_custom_call.1} parent=1 // pred_region
      _
    $region25: #{tpu_custom_call.1} parent=1 // pred_fallthru
      _
    // Predicated region
    $region26: #{tpu_custom_call.1} parent=1 // pred_check
      _
    $region27: #{tpu_custom_call.1} parent=1 // pred_check_branch
      %37 = sbr.rel (0) target = $region29
    $region28: #{tpu_custom_call.1} parent=1 // pred_region
      _
    $region29: #{tpu_custom_call.1} parent=1 // pred_fallthru
      _
    // Predicated region
    $region30: #{tpu_custom_call.1} parent=1 // pred_check
      _
    $region31: #{tpu_custom_call.1} parent=1 // pred_check_branch
      %39 = sbr.rel (0) target = $region33
    $region32: #{tpu_custom_call.1} parent=1 // pred_region
      %40 = dma.done [#allocation4], 128
    $region33: #{tpu_custom_call.1} parent=1 // pred_fallthru
      _
    %v41 = vld [vmem:[%s1] sm:$0xff]
    %v42 = vld [vmem:[%s1 + $0x8] sm:$0xff]
    %v43 = vld [vmem:[%s1 + $0x10] sm:$0xff]
    %v44 = vld [vmem:[%s1 + $0x18] sm:$0xff]
    %v45 = vld [vmem:[%s2] sm:$0xff]
    %v46 = vld [vmem:[%s2 + $0x8] sm:$0xff]
    %v47 = vld [vmem:[%s2 + $0x10] sm:$0xff]
    %v48 = vld [vmem:[%s2 + $0x18] sm:$0xff]
    %v49 = vld [vmem:[#allocation3] sm:$0xff]
    %51 = vset.pattern.permute.xlu0 0
    %52 = vperm.xlu0 %51, %v45
    %v53 = vpop.permute.xlu0 %52
    %56 = vset.pattern.permute.xlu0 0
    %57 = vperm.xlu0 %56, %v46
    %v58 = vpop.permute.xlu0 %57
    %61 = vset.pattern.permute.xlu0 0
    %62 = vperm.xlu0 %61, %v47
    %v63 = vpop.permute.xlu0 %62
    %66 = vset.pattern.permute.xlu0 0
    %67 = vperm.xlu0 %66, %v48
    %v68 = vpop.permute.xlu0 %67
    %vm70 = vcmask 261120
    %v72 = vsel %vm70, %v41, 0
    %v75 = vsel %vm70, %v42, 0
    %v78 = vsel %vm70, %v43, 0
    %v81 = vsel %vm70, %v44, 0
    %v84 = vsel %vm70, %v49, 0
    %86 = vmatprep.subr.mxu0 0.0
    %87 = vmatpush1.xpose.msra.mxu0 0.0
    %88 = vmatprep.subr.mxu0 0.0
    %89 = vmatpush1.xpose.msra.mxu0 0.0
    %90 = vmatprep.subr.mxu0 0.0
    %91 = vmatpush1.xpose.msra.mxu0 0.0
    %92 = vmatprep.subr.mxu0 0.0
    %93 = vmatpush1.xpose.msra.mxu0 0.0
    %94 = vmatprep.subr.mxu0 0.0
    %95 = vmatpush1.xpose.msra.mxu0 0.0
    %96 = vmatprep.subr.mxu0 0.0
    %97 = vmatpush1.xpose.msra.mxu0 0.0
    %98 = vmatprep.subr.mxu0 0.0
    %99 = vmatpush1.xpose.msra.mxu0 0.0
    %100 = vmatprep.subr.mxu0 0.0
    %101 = vmatpush1.xpose.msra.mxu0 0.0
    %102 = vmatprep.subr.mxu0 0.0
    %103 = vmatpush1.xpose.msra.mxu0 0.0
    %104 = vmatprep.subr.mxu0 0.0
    %105 = vmatpush1.xpose.msra.mxu0 0.0
    %106 = vmatprep.subr.mxu0 0.0
    %107 = vmatpush1.xpose.msra.mxu0 0.0
    %108 = vmatprep.subr.mxu0 0.0
    %109 = vmatpush1.xpose.msra.mxu0 0.0
    %110 = vmatprep.subr.mxu0 0.0
    %111 = vmatpush1.xpose.msra.mxu0 0.0
    %112 = vmatprep.subr.mxu0 0.0
    %113 = vmatpush1.xpose.msra.mxu0 0.0
    %114 = vmatprep.subr.mxu0 0.0
    %115 = vmatpush1.xpose.msra.mxu0 0.0
    %116 = vmatprep.subr.mxu0 0.0
    %117 = vmatpush1.xpose.msra.mxu0 %v84
    %118 = vmatprep.subr.mxu0 0.0
    %119 = vmatpush2.xpose.msra.mxu0 0.0
    %120 = vmatprep.subr.mxu0 0.0
    %121 = vmatpush2.xpose.msra.mxu0 0.0
    %122 = vmatprep.subr.mxu0 0.0
    %123 = vmatpush2.xpose.msra.mxu0 0.0
    %124 = vmatprep.subr.mxu0 0.0
    %125 = vmatpush2.xpose.msra.mxu0 0.0
    %126 = vmatprep.subr.mxu0 0.0
    %127 = vmatpush2.xpose.msra.mxu0 0.0
    %128 = vmatprep.subr.mxu0 0.0
    %129 = vmatpush2.xpose.msra.mxu0 0.0
    %130 = vmatprep.subr.mxu0 0.0
    %131 = vmatpush2.xpose.msra.mxu0 0.0
    %132 = vmatprep.subr.mxu0 0.0
    %133 = vmatpush2.xpose.msra.mxu0 0.0
    %134 = vmatprep.subr.mxu0 0.0
    %135 = vmatpush2.xpose.msra.mxu0 0.0
    %136 = vmatprep.subr.mxu0 0.0
    %137 = vmatpush2.xpose.msra.mxu0 0.0
    %138 = vmatprep.subr.mxu0 0.0
    %139 = vmatpush2.xpose.msra.mxu0 0.0
    %140 = vmatprep.subr.mxu0 0.0
    %141 = vmatpush2.xpose.msra.mxu0 0.0
    %142 = vmatprep.subr.mxu0 0.0
    %143 = vmatpush2.xpose.msra.mxu0 0.0
    %144 = vmatprep.subr.mxu0 0.0
    %145 = vmatpush2.xpose.msra.mxu0 0.0
    %146 = vmatprep.subr.mxu0 0.0
    %147 = vmatpush2.xpose.msra.mxu0 0.0
    %148 = vmatprep.subr.mxu0 0.0
    %149 = vmatpush2.xpose.msra.mxu0 0.0
    %150 = vmatprep.mubr.f32.mxu0 0.0
    %151 = vmatmul.mubr.f32.gmra.mxu0 %v72
    %v152 = vpop.f32.mrf.mxu0
    %v153 = vadd.f32 %v53, %v152
    %v154 = vpop.f32.mrf.mxu0
    %155 = vmatprep.mubr.f32.mxu0 0.0
    %156 = vmatmul.mubr.f32.gmra.mxu0 %v75
    %v157 = vpop.f32.mrf.mxu0
    %v158 = vadd.f32 %v58, %v157
    %v159 = vpop.f32.mrf.mxu0
    %160 = vmatprep.mubr.f32.mxu0 0.0
    %161 = vmatmul.mubr.f32.gmra.mxu0 %v78
    %v162 = vpop.f32.mrf.mxu0
    %v163 = vadd.f32 %v63, %v162
    %v164 = vpop.f32.mrf.mxu0
    %165 = vmatprep.mubr.f32.mxu0 0.0
    %166 = vmatmul.mubr.f32.gmra.mxu0 %v81
    %v167 = vpop.f32.mrf.mxu0
    %v168 = vadd.f32 %v68, %v167
    %v169 = vpop.f32.mrf.mxu0
    %170 = vdwg.mxu0
    %v171 = vmax.f32 %v153, 0.0
    %v172 = vmax.f32 %v158, 0.0
    %v173 = vmax.f32 %v163, 0.0
    %v174 = vmax.f32 %v168, 0.0
    %v175 = vld [vmem:[%s3] sm:$0xff]
    %v176 = vld [vmem:[%s3 + $0x8] sm:$0xff]
    %v177 = vld [vmem:[%s3 + $0x10] sm:$0xff]
    %v178 = vld [vmem:[%s3 + $0x18] sm:$0xff]
    %v179 = vld [vmem:[%s4] sm:$0xff]
    %v180 = vld [vmem:[%s4 + $0x8] sm:$0xff]
    %v181 = vld [vmem:[%s4 + $0x10] sm:$0xff]
    %v182 = vld [vmem:[%s4 + $0x18] sm:$0xff]
    %184 = vset.pattern.permute.xlu0 0
    %185 = vperm.xlu0 %184, %v179
    %v186 = vpop.permute.xlu0 %185
    %189 = vset.pattern.permute.xlu0 0
    %190 = vperm.xlu0 %189, %v180
    %v191 = vpop.permute.xlu0 %190
    %194 = vset.pattern.permute.xlu0 0
    %195 = vperm.xlu0 %194, %v181
    %v196 = vpop.permute.xlu0 %195
    %199 = vset.pattern.permute.xlu0 0
    %200 = vperm.xlu0 %199, %v182
    %v201 = vpop.permute.xlu0 %200
    %v204 = vsel %vm70, %v175, 0
    %v207 = vsel %vm70, %v176, 0
    %v210 = vsel %vm70, %v177, 0
    %v213 = vsel %vm70, %v178, 0
    %215 = vmatprep.subr.mxu0 0.0
    %216 = vmatpush1.msra.mxu0 0.0
    %217 = vmatprep.subr.mxu0 0.0
    %218 = vmatpush1.msra.mxu0 0.0
    %219 = vmatprep.subr.mxu0 0.0
    %220 = vmatpush1.msra.mxu0 0.0
    %221 = vmatprep.subr.mxu0 0.0
    %222 = vmatpush1.msra.mxu0 0.0
    %223 = vmatprep.subr.mxu0 0.0
    %224 = vmatpush1.msra.mxu0 0.0
    %225 = vmatprep.subr.mxu0 0.0
    %226 = vmatpush1.msra.mxu0 0.0
    %227 = vmatprep.subr.mxu0 0.0
    %228 = vmatpush1.msra.mxu0 0.0
    %229 = vmatprep.subr.mxu0 0.0
    %230 = vmatpush1.msra.mxu0 0.0
    %231 = vmatprep.subr.mxu0 0.0
    %232 = vmatpush1.msra.mxu0 0.0
    %233 = vmatprep.subr.mxu0 0.0
    %234 = vmatpush1.msra.mxu0 0.0
    %235 = vmatprep.subr.mxu0 0.0
    %236 = vmatpush1.msra.mxu0 0.0
    %237 = vmatprep.subr.mxu0 0.0
    %238 = vmatpush1.msra.mxu0 0.0
    %239 = vmatprep.subr.mxu0 0.0
    %240 = vmatpush1.msra.mxu0 %v174
    %241 = vmatprep.subr.mxu0 0.0
    %242 = vmatpush1.msra.mxu0 %v173
    %243 = vmatprep.subr.mxu0 0.0
    %244 = vmatpush1.msra.mxu0 %v172
    %245 = vmatprep.subr.mxu0 0.0
    %246 = vmatpush1.msra.mxu0 %v171
    %247 = vmatprep.subr.mxu0 0.0
    %248 = vmatpush2.msra.mxu0 0.0
    %249 = vmatprep.subr.mxu0 0.0
    %250 = vmatpush2.msra.mxu0 0.0
    %251 = vmatprep.subr.mxu0 0.0
    %252 = vmatpush2.msra.mxu0 0.0
    %253 = vmatprep.subr.mxu0 0.0
    %254 = vmatpush2.msra.mxu0 0.0
    %255 = vmatprep.subr.mxu0 0.0
    %256 = vmatpush2.msra.mxu0 0.0
    %257 = vmatprep.subr.mxu0 0.0
    %258 = vmatpush2.msra.mxu0 0.0
    %259 = vmatprep.subr.mxu0 0.0
    %260 = vmatpush2.msra.mxu0 0.0
    %261 = vmatprep.subr.mxu0 0.0
    %262 = vmatpush2.msra.mxu0 0.0
    %263 = vmatprep.subr.mxu0 0.0
    %264 = vmatpush2.msra.mxu0 0.0
    %265 = vmatprep.subr.mxu0 0.0
    %266 = vmatpush2.msra.mxu0 0.0
    %267 = vmatprep.subr.mxu0 0.0
    %268 = vmatpush2.msra.mxu0 0.0
    %269 = vmatprep.subr.mxu0 0.0
    %270 = vmatpush2.msra.mxu0 0.0
    %271 = vmatprep.subr.mxu0 0.0
    %272 = vmatpush2.msra.mxu0 0.0
    %273 = vmatprep.subr.mxu0 0.0
    %274 = vmatpush2.msra.mxu0 0.0
    %275 = vmatprep.subr.mxu0 0.0
    %276 = vmatpush2.msra.mxu0 0.0
    %277 = vmatprep.subr.mxu0 0.0
    %278 = vmatpush2.msra.mxu0 0.0
    %279 = vmatprep.mubr.f32.mxu0 0.0
    %280 = vmatmul.mubr.f32.gmra.mxu0 %v204
    %v281 = vpop.f32.mrf.mxu0
    %v282 = vadd.f32 %v186, %v281
    %v283 = vpop.f32.mrf.mxu0
    %284 = vmatprep.mubr.f32.mxu0 0.0
    %285 = vmatmul.mubr.f32.gmra.mxu0 %v207
    %v286 = vpop.f32.mrf.mxu0
    %v287 = vadd.f32 %v191, %v286
    %v288 = vpop.f32.mrf.mxu0
    %289 = vmatprep.mubr.f32.mxu0 0.0
    %290 = vmatmul.mubr.f32.gmra.mxu0 %v210
    %v291 = vpop.f32.mrf.mxu0
    %v292 = vadd.f32 %v196, %v291
    %v293 = vpop.f32.mrf.mxu0
    %294 = vmatprep.mubr.f32.mxu0 0.0
    %295 = vmatmul.mubr.f32.gmra.mxu0 %v213
    %v296 = vpop.f32.mrf.mxu0
    %v297 = vadd.f32 %v201, %v296
    %v298 = vpop.f32.mrf.mxu0
    %299 = vdwg.mxu0
    %v300 = vmax.f32 %v282, 0.0
    %v301 = vmax.f32 %v287, 0.0
    %v302 = vmax.f32 %v292, 0.0
    %v303 = vmax.f32 %v297, 0.0
    %v304 = vld [vmem:[%s5] sm:$0x1]
    %v305 = vld [vmem:[#allocation2] sm:$0x1]
    %307 = vset.pattern.permute.xlu0 0
    %308 = vperm.xlu0 %307, %v305
    %v309 = vpop.permute.xlu0 %308
    %v311 = vlaneseq
    %v312 = vshrl.u32 %v311, 7
    %v313 = vsub.s32 0, %v312
    %v314 = vrot.slane %v309, %v313
    %v316 = vsel %vm70, %v304, 0
    %318 = vmatprep.subr.mxu0 0.0
    %319 = vmatpush1.msra.mxu0 0.0
    %320 = vmatprep.subr.mxu0 0.0
    %321 = vmatpush1.msra.mxu0 0.0
    %322 = vmatprep.subr.mxu0 0.0
    %323 = vmatpush1.msra.mxu0 0.0
    %324 = vmatprep.subr.mxu0 0.0
    %325 = vmatpush1.msra.mxu0 0.0
    %326 = vmatprep.subr.mxu0 0.0
    %327 = vmatpush1.msra.mxu0 0.0
    %328 = vmatprep.subr.mxu0 0.0
    %329 = vmatpush1.msra.mxu0 0.0
    %330 = vmatprep.subr.mxu0 0.0
    %331 = vmatpush1.msra.mxu0 0.0
    %332 = vmatprep.subr.mxu0 0.0
    %333 = vmatpush1.msra.mxu0 0.0
    %334 = vmatprep.subr.mxu0 0.0
    %335 = vmatpush1.msra.mxu0 0.0
    %336 = vmatprep.subr.mxu0 0.0
    %337 = vmatpush1.msra.mxu0 0.0
    %338 = vmatprep.subr.mxu0 0.0
    %339 = vmatpush1.msra.mxu0 0.0
    %340 = vmatprep.subr.mxu0 0.0
    %341 = vmatpush1.msra.mxu0 0.0
    %342 = vmatprep.subr.mxu0 0.0
    %343 = vmatpush1.msra.mxu0 %v303
    %344 = vmatprep.subr.mxu0 0.0
    %345 = vmatpush1.msra.mxu0 %v302
    %346 = vmatprep.subr.mxu0 0.0
    %347 = vmatpush1.msra.mxu0 %v301
    %348 = vmatprep.subr.mxu0 0.0
    %349 = vmatpush1.msra.mxu0 %v300
    %350 = vmatprep.subr.mxu0 0.0
    %351 = vmatpush2.msra.mxu0 0.0
    %352 = vmatprep.subr.mxu0 0.0
    %353 = vmatpush2.msra.mxu0 0.0
    %354 = vmatprep.subr.mxu0 0.0
    %355 = vmatpush2.msra.mxu0 0.0
    %356 = vmatprep.subr.mxu0 0.0
    %357 = vmatpush2.msra.mxu0 0.0
    %358 = vmatprep.subr.mxu0 0.0
    %359 = vmatpush2.msra.mxu0 0.0
    %360 = vmatprep.subr.mxu0 0.0
    %361 = vmatpush2.msra.mxu0 0.0
    %362 = vmatprep.subr.mxu0 0.0
    %363 = vmatpush2.msra.mxu0 0.0
    %364 = vmatprep.subr.mxu0 0.0
    %365 = vmatpush2.msra.mxu0 0.0
    %366 = vmatprep.subr.mxu0 0.0
    %367 = vmatpush2.msra.mxu0 0.0
    %368 = vmatprep.subr.mxu0 0.0
    %369 = vmatpush2.msra.mxu0 0.0
    %370 = vmatprep.subr.mxu0 0.0
    %371 = vmatpush2.msra.mxu0 0.0
    %372 = vmatprep.subr.mxu0 0.0
    %373 = vmatpush2.msra.mxu0 0.0
    %374 = vmatprep.subr.mxu0 0.0
    %375 = vmatpush2.msra.mxu0 0.0
    %376 = vmatprep.subr.mxu0 0.0
    %377 = vmatpush2.msra.mxu0 0.0
    %378 = vmatprep.subr.mxu0 0.0
    %379 = vmatpush2.msra.mxu0 0.0
    %380 = vmatprep.subr.mxu0 0.0
    %381 = vmatpush2.msra.mxu0 0.0
    %382 = vmatprep.mubr.f32.mxu0 0.0
    %383 = vmatmul.mubr.f32.gmra.mxu0 %v316
    %v384 = vpop.f32.mrf.mxu0
    %v385 = vadd.f32 %v314, %v384
    %v386 = vpop.f32.mrf.mxu0
    %387 = vdwg.mxu0
    %vm388 = vcmask 57344
    %389 = vst.msk [vmem:[#allocation6] sm:$0x1] %vm388, %v385
    // Predicated region
    $region34: #{tpu_custom_call.1} parent=1 // pred_check
      _
    $region35: #{tpu_custom_call.1} parent=1 // pred_check_branch
      %391 = sbr.rel (0) target = $region37
    $region36: #{tpu_custom_call.1} parent=1 // pred_region
      %s393 = ssub.s32 16, 16
      %394 = vsyncadd [#allocation5], %s393
      %s396 = sshll.u32 [#allocation6], 4
      %s397 = int_to_ptr.vmem [resolvable:$true] %s396
      %399 = dma.vmem_to_hbm [thread:$0]  %s397, 16, %s7, [#allocation5]
    $region37: #{tpu_custom_call.1} parent=1 // pred_fallthru
      _
    // Predicated region
    $region38: #{tpu_custom_call.1} parent=1 // pred_check
      _
    $region39: #{tpu_custom_call.1} parent=1 // pred_check_branch
      %401 = sbr.rel (0) target = $region41
    $region40: #{tpu_custom_call.1} parent=1 // pred_region
      %402 = dma.done [#allocation5], 16
    $region41: #{tpu_custom_call.1} parent=1 // pred_fallthru
      _
    %403 = vsyncpa [#allocation4], 1
    %404 = vsyncpa [#allocation5], 1

</llo_original>
